<compile_context>
chip_gen: v6e
topology: v6e:2x2x1
jax: 0.10.0
libtpu: 0.0.40
codegen_flags: <defaults>
</compile_context>

<pallas_src>
import functools
import math

import jax
import jax.numpy as jnp
import numpy as np
from jax import lax
from jax.experimental import pallas as pl
from jax.experimental.pallas import tpu as pltpu

EPS = 1e-5          # nn.InstanceNorm2d default eps
NEG_SLOPE = 0.2     # LeakyReLU negative_slope


# ---------------------------------------------------------------------------
# Fused kernel: matmul (transpose conv) + InstanceNorm + LeakyReLU
# grid = (batch, pass, pixel_tile); pass 0 = stats, pass 1 = normalize+write
# ---------------------------------------------------------------------------
def _tconv_in_lrelu_kernel(x_ref, w_ref, o_ref,
                           xsum_ref, gram_ref, mean_ref, istd_ref,
                           *, cp, inv_n):
    # x_ref: (1, TM, Cin) bf16      w_ref: (Cin, 4*cp) bf16
    # o_ref: (1, TM, 4*cp)          scratch: colsum(x), Gram, mean, inv_std
    p = pl.program_id(1)
    m = pl.program_id(2)
    last_m = pl.num_programs(2) - 1

    @pl.when(p == 0)
    def _stats_pass():
        x = x_ref[0]                                     # (TM, Cin) bf16

        @pl.when(m == 0)
        def _():
            xsum_ref[...] = jnp.zeros_like(xsum_ref)
            gram_ref[...] = jnp.zeros_like(gram_ref)

        xsum_ref[...] += jnp.sum(x.astype(jnp.float32), axis=0, keepdims=True)
        # X^T X on the MXU (f32 accumulation) -- replaces the previous
        # duplicated (TM,Cin)x(Cin,4*Cout) matmul + y*y + column reduces.
        gram_ref[...] += lax.dot_general(
            x, x, (((0,), (0,)), ((), ())),
            preferred_element_type=jnp.float32)

        @pl.when(m == last_m)
        def _finalize():
            w32 = w_ref[...].astype(jnp.float32)         # (Cin, 4*cp)
            # Per-column sums / sumsq of y, recovered from x statistics.
            col_sum = jnp.dot(xsum_ref[...], w32,
                              preferred_element_type=jnp.float32)   # (1, 4cp)
            gw = jnp.dot(gram_ref[...], w32,
                         preferred_element_type=jnp.float32)        # (Cin,4cp)
            col_ssq = jnp.sum(w32 * gw, axis=0, keepdims=True)      # (1, 4cp)
            # Fold the 4 sub-pixel column groups (dy, dx) per channel.
            mean_c = (col_sum[:, 0 * cp:1 * cp] + col_sum[:, 1 * cp:2 * cp]
                      + col_sum[:, 2 * cp:3 * cp] + col_sum[:, 3 * cp:4 * cp]) * inv_n
            ex2_c = (col_ssq[:, 0 * cp:1 * cp] + col_ssq[:, 1 * cp:2 * cp]
                     + col_ssq[:, 2 * cp:3 * cp] + col_ssq[:, 3 * cp:4 * cp]) * inv_n
            var_c = jnp.maximum(ex2_c - mean_c * mean_c, 0.0)
            istd_c = lax.rsqrt(var_c + EPS)
            # Broadcast back over the 4 column groups.
            mean_ref[...] = jnp.concatenate([mean_c] * 4, axis=-1)
            istd_ref[...] = jnp.concatenate([istd_c] * 4, axis=-1)

    @pl.when(p == 1)
    def _apply_pass():
        y = jnp.dot(x_ref[0], w_ref[...], preferred_element_type=jnp.float32)
        yn = (y - mean_ref[...]) * istd_ref[...]         # InstanceNorm2d
        o_ref[0] = jnp.where(yn >= 0.0, yn, NEG_SLOPE * yn).astype(o_ref.dtype)


# ---------------------------------------------------------------------------
# Wrapper helpers
# ---------------------------------------------------------------------------
def _device_config():
    """Generation-aware VMEM budget and pixel-tile-row target."""
    kind = ""
    try:
        kind = jax.devices()[0].device_kind.lower()
    except Exception:
        pass
    if "v7" in kind or "7x" in kind:
        # v7x: 64 MiB VMEM per TensorCore -> keep real headroom.
        return {"vmem_cap": 40 * 1024 * 1024, "tm_target": 2048}
    if any(t in kind for t in ("v4", "v5", "v6")):
        # 128 MiB VMEM -> bigger tiles, fewer grid steps.
        return {"vmem_cap": 96 * 1024 * 1024, "tm_target": 4096}
    # Unknown generation: be conservative (v7x-like).
    return {"vmem_cap": 40 * 1024 * 1024, "tm_target": 2048}


def _pick_tm(hw, target):
    """Largest multiple-of-8 divisor of H*W that is <= target (or full H*W)."""
    if hw <= target:
        return hw
    best = None
    for d in range(8, target + 1, 8):
        if hw % d == 0:
            best = d
    # TODO(synk): pad H*W to a multiple of 8 (masked tail) instead of falling
    # back to a full-extent block for awkward H*W.
    return best if best is not None else hw


def _vmem_footprint(tm, cin, ncols, in_bytes, out_bytes):
    x_blk = tm * cin * in_bytes
    w_blk = cin * ncols * in_bytes
    o_blk = tm * ncols * out_bytes
    scratch = 4 * (cin * cin + cin + 2 * ncols) + (64 << 10)
    return 2 * (x_blk + w_blk + o_blk) + scratch        # 2x: double buffering


def transpose_conv_block_fwd(x, weight, *, tm=None,
                             compute_dtype=jnp.bfloat16,
                             out_dtype=jnp.bfloat16,
                             input_layout="NCHW",
                             output_layout="NCHW"):
    """TransposeConvBlock forward.

    x:      (N, Cin, H, W) if input_layout == "NCHW", else (N, H, W, Cin)
    weight: (Cin, Cout, 2, 2)  (PyTorch ConvTranspose2d layout, bias=False)
    Returns (N, Cout, 2H, 2W) (default) or (N, 2H, 2W, Cout) for "NHWC".

    Producing/consuming NHWC avoids the NCHW<->NHWC transposes outside the
    kernel (the kernel only sees the lane-dense (N, H*W, 4*Cout) slab).
    """
    if input_layout == "NCHW":
        N, Cin, H, W = x.shape
        xm = jnp.transpose(x, (0, 2, 3, 1))
    elif input_layout == "NHWC":
        N, H, W, Cin = x.shape
        xm = x
    else:
        raise ValueError(input_layout)
    assert weight.shape[0] == Cin and weight.shape[2:] == (2, 2), weight.shape
    Cout = weight.shape[1]
    HW = H * W
    xm = xm.reshape(N, HW, Cin).astype(compute_dtype)

    # Pad the per-group channel count so the kernel output stays lane-dense
    # (>= 128 lanes) even for shallow blocks; padded channels are dropped at
    # the end (their stats are harmless zeros).
    Cp = max(32, -(-Cout // 8) * 8)
    ncols = 4 * Cp

    # Columns ordered (dy, dx, co): col = (dy*2 + dx)*Cp + co.
    wm = jnp.transpose(weight, (0, 2, 3, 1)).reshape(Cin, 4, Cout)
    if Cp != Cout:
        wm = jnp.pad(wm, ((0, 0), (0, 0), (0, Cp - Cout)))
    wm = wm.reshape(Cin, ncols).astype(compute_dtype)

    cfg = _device_config()
    in_b = jnp.dtype(compute_dtype).itemsize
    out_b = jnp.dtype(out_dtype).itemsize
    if tm is None:
        target = cfg["tm_target"]
        tm = _pick_tm(HW, target)
        while (_vmem_footprint(tm, Cin, ncols, in_b, out_b)
               > 0.7 * cfg["vmem_cap"] and target > 8):
            target //= 2
            tm = _pick_tm(HW, target)
    assert HW % tm == 0 and (tm % 8 == 0 or tm == HW), (HW, tm)
    mt = HW // tm

    vmem_limit = int(min(cfg["vmem_cap"],
                         max(2 * _vmem_footprint(tm, Cin, ncols, in_b, out_b),
                             32 * 1024 * 1024)))

    kernel = functools.partial(_tconv_in_lrelu_kernel, cp=Cp,
                               inv_n=1.0 / (4.0 * HW))

    # TODO(synk): for N == 1 on v7x, split the pixel-tile range over a leading
    # size-2 "parallel" axis with per-core partial (colsum, Gram) accumulators
    # combined before pass 1, so the second TensorCore is not idle.
    y = pl.pallas_call(
        kernel,
        out_shape=jax.ShapeDtypeStruct((N, HW, ncols), out_dtype),
        grid=(N, 2, mt),
        in_specs=[
            pl.BlockSpec((1, tm, Cin), lambda n, p, m: (n, m, 0)),
            pl.BlockSpec((Cin, ncols), lambda n, p, m: (0, 0)),
        ],
        # Pass 0: the output window parks on block (n, 0) (never written, and
        # never flushed because its index does not change); pass 1 walks the
        # pixel tiles and writes the normalized result.
        out_specs=pl.BlockSpec((1, tm, ncols), lambda n, p, m: (n, m * p, 0)),
        scratch_shapes=[
            pltpu.VMEM((1, Cin), jnp.float32),      # colsum(x)
            pltpu.VMEM((Cin, Cin), jnp.float32),    # Gram = X^T X
            pltpu.VMEM((1, ncols), jnp.float32),    # broadcast mean
            pltpu.VMEM((1, ncols), jnp.float32),    # broadcast inv_std
        ],
        compiler_params=pltpu.CompilerParams(
            dimension_semantics=("parallel", "arbitrary", "arbitrary"),
            vmem_limit_bytes=vmem_limit,
        ),
    )(xm, wm)

    # 2x2 pixel shuffle back to spatial layout (plain-JAX layout glue; use
    # output_layout="NHWC" downstream to skip the final NCHW transpose).
    y = y.reshape(N, H, W, 2, 2, Cp)
    y = jnp.transpose(y, (0, 1, 3, 2, 4, 5)).reshape(N, 2 * H, 2 * W, Cp)
    if Cp != Cout:
        y = y[..., :Cout]
    if output_layout == "NHWC":
        return y
    return jnp.transpose(y, (0, 3, 1, 2))


# ---------------------------------------------------------------------------
# Pure-JAX (XLA, f32) reference for correctness checking
# ---------------------------------------------------------------------------
def _ref_forward(x, w):
    N, Cin, H, W = x.shape
    Cout = w.shape[1]
    y = jnp.einsum("nchw,cokl->nohkwl", x, w).reshape(N, Cout, 2 * H, 2 * W)
    mean = y.mean(axis=(2, 3), keepdims=True)
    var = y.var(axis=(2, 3), keepdims=True)
    z = (y - mean) * lax.rsqrt(var + EPS)
    return jnp.where(z >= 0, z, NEG_SLOPE * z)


# ---------------------------------------------------------------------------
if __name__ == "__main__":
    key = jax.random.PRNGKey(0)
    kx, kw = jax.random.split(key)

    # Typical UNet up-path block: in_channels = 2 * out_channels.
    # Cout=32 -> the kernel's output slab is exactly 128 lanes wide.
    N, Cin, H, W = 2, 64, 16, 16
    Cout = 32

    x = jax.random.normal(kx, (N, Cin, H, W), jnp.float32)
    bound = 1.0 / math.sqrt(Cin * 4)
    w = jax.random.uniform(kw, (Cin, Cout, 2, 2), jnp.float32, -bound, bound)

    # tm=64 forces 4 pixel tiles so the tiled stats accumulation + two-pass
    # normalization path is actually exercised (HW = 256).
    fwd = jax.jit(lambda a, b: transpose_conv_block_fwd(a, b, tm=64))
    out = jax.block_until_ready(fwd(x, w))
    assert out.shape == (N, Cout, 2 * H, 2 * W), out.shape

    ref = jax.block_until_ready(_ref_forward(x, w))
    # Tolerance accounts for bf16 MXU operands + bf16 output (f32 stats).
    np.testing.assert_allclose(np.asarray(out.astype(jnp.float32)),
                               np.asarray(ref), rtol=3e-2, atol=3e-2)

    print("KERNEL_OK")
</pallas_src>

<mosaic_0001>
module attributes {stable_mosaic.version = 11 : i64} {
  func.func @_tconv_in_lrelu_kernel(%arg0: i32, %arg1: i32, %arg2: i32, %arg3: memref<1x64x64xbf16, #tpu.memory_space<vmem>>, %arg4: memref<64x128xbf16, #tpu.memory_space<vmem>>, %arg5: memref<1x64x128xbf16, #tpu.memory_space<vmem>>, %arg6: memref<1x64xf32, #tpu.memory_space<vmem>>, %arg7: memref<64x64xf32, #tpu.memory_space<vmem>>, %arg8: memref<1x128xf32, #tpu.memory_space<vmem>>, %arg9: memref<1x128xf32, #tpu.memory_space<vmem>>) attributes {dimension_semantics = [#tpu.dimension_semantics<parallel>, #tpu.dimension_semantics<arbitrary>, #tpu.dimension_semantics<arbitrary>], iteration_bounds = array<i64: 2, 2, 4>, scalar_prefetch = 0 : i64, scratch_operands = 4 : i64, tpu.core_type = #tpu.core_type<tc>, window_params = [{transform_indices = @transform_0, window_bounds = array<i64: 1, 64, 64>}, {pipeline_mode = #tpu.pipeline_mode<synchronous>, transform_indices = @transform_1, window_bounds = array<i64: 64, 128>}, {transform_indices = @transform_2, window_bounds = array<i64: 1, 64, 128>}]} {
    %c0_i32 = arith.constant 0 : i32
    %0 = arith.cmpi eq, %arg1, %c0_i32 : i32
    %1 = arith.extui %0 : i1 to i32
    %c0_i32_0 = arith.constant 0 : i32
    %2 = arith.cmpi ne, %1, %c0_i32_0 : i32
    scf.if %2 {
      %c0 = arith.constant 0 : index
      %c0_2 = arith.constant 0 : index
      %c0_3 = arith.constant 0 : index
      %6 = vector.load %arg3[%c0, %c0_2, %c0_3] : memref<1x64x64xbf16, #tpu.memory_space<vmem>>, vector<1x64x64xbf16>
      %7 = vector.shape_cast %6 : vector<1x64x64xbf16> to vector<64x64xbf16>
      %c0_i32_4 = arith.constant 0 : i32
      %8 = arith.cmpi eq, %arg2, %c0_i32_4 : i32
      %9 = arith.extui %8 : i1 to i32
      %c0_i32_5 = arith.constant 0 : i32
      %10 = arith.cmpi ne, %9, %c0_i32_5 : i32
      scf.if %10 {
        %cst_16 = arith.constant 0.000000e+00 : f32
        %24 = vector.broadcast %cst_16 : f32 to vector<1x64xf32>
        %c0_17 = arith.constant 0 : index
        %c0_18 = arith.constant 0 : index
        %25 = vector.load %arg6[%c0_17, %c0_18] : memref<1x64xf32, #tpu.memory_space<vmem>>, vector<1x64xf32>
        tpu.vector_store %arg6[%c0_17, %c0_18], %24 {strides = array<i32>} : memref<1x64xf32, #tpu.memory_space<vmem>>, vector<1x64xf32>,
        %cst_19 = arith.constant 0.000000e+00 : f32
        %26 = vector.broadcast %cst_19 : f32 to vector<64x64xf32>
        %c0_20 = arith.constant 0 : index
        %c0_21 = arith.constant 0 : index
        %27 = vector.load %arg7[%c0_20, %c0_21] : memref<64x64xf32, #tpu.memory_space<vmem>>, vector<64x64xf32>
        tpu.vector_store %arg7[%c0_20, %c0_21], %26 {strides = array<i32>} : memref<64x64xf32, #tpu.memory_space<vmem>>, vector<64x64xf32>,
      } else {
      }
      %c0_6 = arith.constant 0 : index
      %c0_7 = arith.constant 0 : index
      %11 = vector.load %arg6[%c0_6, %c0_7] : memref<1x64xf32, #tpu.memory_space<vmem>>, vector<1x64xf32>
      %12 = arith.extf %7 : vector<64x64xbf16> to vector<64x64xf32>
      %cst = arith.constant dense<0.000000e+00> : vector<64xf32>
      %13 = vector.multi_reduction <add>, %12, %cst [0] : vector<64x64xf32> to vector<64xf32>
      %14 = vector.shape_cast %13 : vector<64xf32> to vector<1x64xf32>
      %15 = arith.addf %11, %14 : vector<1x64xf32>
      %c0_8 = arith.constant 0 : index
      %c0_9 = arith.constant 0 : index
      %16 = vector.load %arg6[%c0_8, %c0_9] : memref<1x64xf32, #tpu.memory_space<vmem>>, vector<1x64xf32>
      tpu.vector_store %arg6[%c0_8, %c0_9], %15 {strides = array<i32>} : memref<1x64xf32, #tpu.memory_space<vmem>>, vector<1x64xf32>,
      %c0_10 = arith.constant 0 : index
      %c0_11 = arith.constant 0 : index
      %17 = vector.load %arg7[%c0_10, %c0_11] : memref<64x64xf32, #tpu.memory_space<vmem>>, vector<64x64xf32>
      %cst_12 = arith.constant dense<0.000000e+00> : vector<64x64xf32>
      %18 = tpu.matmul %7, %7, %cst_12 {dimension_numbers = #tpu.dot_dimension_numbers<[0], [0], [1], [1], [0, 1, 1, 1], [], []>} : vector<64x64xbf16>, vector<64x64xbf16>, vector<64x64xf32> -> vector<64x64xf32>
      %19 = arith.addf %17, %18 : vector<64x64xf32>
      %c0_13 = arith.constant 0 : index
      %c0_14 = arith.constant 0 : index
      %20 = vector.load %arg7[%c0_13, %c0_14] : memref<64x64xf32, #tpu.memory_space<vmem>>, vector<64x64xf32>
      tpu.vector_store %arg7[%c0_13, %c0_14], %19 {strides = array<i32>} : memref<64x64xf32, #tpu.memory_space<vmem>>, vector<64x64xf32>,
      %c3_i32 = arith.constant 3 : i32
      %21 = arith.cmpi eq, %arg2, %c3_i32 : i32
      %22 = arith.extui %21 : i1 to i32
      %c0_i32_15 = arith.constant 0 : i32
      %23 = arith.cmpi ne, %22, %c0_i32_15 : i32
      scf.if %23 {
        %c0_16 = arith.constant 0 : index
        %c0_17 = arith.constant 0 : index
        %24 = vector.load %arg4[%c0_16, %c0_17] : memref<64x128xbf16, #tpu.memory_space<vmem>>, vector<64x128xbf16>
        %25 = arith.extf %24 : vector<64x128xbf16> to vector<64x128xf32>
        %c0_18 = arith.constant 0 : index
        %c0_19 = arith.constant 0 : index
        %26 = vector.load %arg6[%c0_18, %c0_19] : memref<1x64xf32, #tpu.memory_space<vmem>>, vector<1x64xf32>
        %cst_20 = arith.constant dense<0.000000e+00> : vector<1x128xf32>
        %27 = tpu.matmul %26, %25, %cst_20 {dimension_numbers = #tpu.dot_dimension_numbers<[1], [0], [0], [1], [0, 0, 1, 1], [], []>} : vector<1x64xf32>, vector<64x128xf32>, vector<1x128xf32> -> vector<1x128xf32>
        %c0_21 = arith.constant 0 : index
        %c0_22 = arith.constant 0 : index
        %28 = vector.load %arg7[%c0_21, %c0_22] : memref<64x64xf32, #tpu.memory_space<vmem>>, vector<64x64xf32>
        %cst_23 = arith.constant dense<0.000000e+00> : vector<64x128xf32>
        %29 = tpu.matmul %28, %25, %cst_23 {dimension_numbers = #tpu.dot_dimension_numbers<[1], [0], [0], [1], [0, 0, 1, 1], [], []>} : vector<64x64xf32>, vector<64x128xf32>, vector<64x128xf32> -> vector<64x128xf32>
        %30 = arith.mulf %25, %29 : vector<64x128xf32>
        %cst_24 = arith.constant dense<0.000000e+00> : vector<128xf32>
        %31 = vector.multi_reduction <add>, %30, %cst_24 [0] : vector<64x128xf32> to vector<128xf32>
        %32 = vector.shape_cast %31 : vector<128xf32> to vector<1x128xf32>
        %33 = vector.extract_strided_slice %27 {offsets = [0, 0], sizes = [1, 32], strides = [1, 1]} : vector<1x128xf32> to vector<1x32xf32>
        %34 = vector.extract_strided_slice %27 {offsets = [0, 32], sizes = [1, 32], strides = [1, 1]} : vector<1x128xf32> to vector<1x32xf32>
        %35 = arith.addf %33, %34 : vector<1x32xf32>
        %36 = vector.extract_strided_slice %27 {offsets = [0, 64], sizes = [1, 32], strides = [1, 1]} : vector<1x128xf32> to vector<1x32xf32>
        %37 = arith.addf %35, %36 : vector<1x32xf32>
        %38 = vector.extract_strided_slice %27 {offsets = [0, 96], sizes = [1, 32], strides = [1, 1]} : vector<1x128xf32> to vector<1x32xf32>
        %39 = arith.addf %37, %38 : vector<1x32xf32>
        %cst_25 = arith.constant 9.765625E-4 : f32
        %40 = vector.broadcast %cst_25 : f32 to vector<1x32xf32>
        %41 = arith.mulf %39, %40 : vector<1x32xf32>
        %42 = vector.extract_strided_slice %32 {offsets = [0, 0], sizes = [1, 32], strides = [1, 1]} : vector<1x128xf32> to vector<1x32xf32>
        %43 = vector.extract_strided_slice %32 {offsets = [0, 32], sizes = [1, 32], strides = [1, 1]} : vector<1x128xf32> to vector<1x32xf32>
        %44 = arith.addf %42, %43 : vector<1x32xf32>
        %45 = vector.extract_strided_slice %32 {offsets = [0, 64], sizes = [1, 32], strides = [1, 1]} : vector<1x128xf32> to vector<1x32xf32>
        %46 = arith.addf %44, %45 : vector<1x32xf32>
        %47 = vector.extract_strided_slice %32 {offsets = [0, 96], sizes = [1, 32], strides = [1, 1]} : vector<1x128xf32> to vector<1x32xf32>
        %48 = arith.addf %46, %47 : vector<1x32xf32>
        %cst_26 = arith.constant 9.765625E-4 : f32
        %49 = vector.broadcast %cst_26 : f32 to vector<1x32xf32>
        %50 = arith.mulf %48, %49 : vector<1x32xf32>
        %51 = arith.mulf %41, %41 : vector<1x32xf32>
        %52 = arith.subf %50, %51 : vector<1x32xf32>
        %cst_27 = arith.constant 0.000000e+00 : f32
        %53 = vector.broadcast %cst_27 : f32 to vector<1x32xf32>
        %54 = arith.maximumf %52, %53 : vector<1x32xf32>
        %cst_28 = arith.constant 9.99999974E-6 : f32
        %55 = vector.broadcast %cst_28 : f32 to vector<1x32xf32>
        %56 = arith.addf %54, %55 : vector<1x32xf32>
        %57 = math.rsqrt %56 : vector<1x32xf32>
        %58 = tpu.concatenate %41, %41, %41, %41 in 1 : vector<1x32xf32>, vector<1x32xf32>, vector<1x32xf32>, vector<1x32xf32> -> vector<1x128xf32>
        %c0_29 = arith.constant 0 : index
        %c0_30 = arith.constant 0 : index
        %59 = vector.load %arg8[%c0_29, %c0_30] : memref<1x128xf32, #tpu.memory_space<vmem>>, vector<1x128xf32>
        tpu.vector_store %arg8[%c0_29, %c0_30], %58 {strides = array<i32>} : memref<1x128xf32, #tpu.memory_space<vmem>>, vector<1x128xf32>,
        %60 = tpu.concatenate %57, %57, %57, %57 in 1 : vector<1x32xf32>, vector<1x32xf32>, vector<1x32xf32>, vector<1x32xf32> -> vector<1x128xf32>
        %c0_31 = arith.constant 0 : index
        %c0_32 = arith.constant 0 : index
        %61 = vector.load %arg9[%c0_31, %c0_32] : memref<1x128xf32, #tpu.memory_space<vmem>>, vector<1x128xf32>
        tpu.vector_store %arg9[%c0_31, %c0_32], %60 {strides = array<i32>} : memref<1x128xf32, #tpu.memory_space<vmem>>, vector<1x128xf32>,
      } else {
      }
    } else {
    }
    %c1_i32 = arith.constant 1 : i32
    %3 = arith.cmpi eq, %arg1, %c1_i32 : i32
    %4 = arith.extui %3 : i1 to i32
    %c0_i32_1 = arith.constant 0 : i32
    %5 = arith.cmpi ne, %4, %c0_i32_1 : i32
    scf.if %5 {
      %c0 = arith.constant 0 : index
      %c0_2 = arith.constant 0 : index
      %c0_3 = arith.constant 0 : index
      %6 = vector.load %arg3[%c0, %c0_2, %c0_3] : memref<1x64x64xbf16, #tpu.memory_space<vmem>>, vector<1x64x64xbf16>
      %7 = vector.shape_cast %6 : vector<1x64x64xbf16> to vector<64x64xbf16>
      %c0_4 = arith.constant 0 : index
      %c0_5 = arith.constant 0 : index
      %8 = vector.load %arg4[%c0_4, %c0_5] : memref<64x128xbf16, #tpu.memory_space<vmem>>, vector<64x128xbf16>
      %cst = arith.constant dense<0.000000e+00> : vector<64x128xf32>
      %9 = tpu.matmul %7, %8, %cst {dimension_numbers = #tpu.dot_dimension_numbers<[1], [0], [0], [1], [0, 0, 1, 1], [], []>} : vector<64x64xbf16>, vector<64x128xbf16>, vector<64x128xf32> -> vector<64x128xf32>
      %c0_6 = arith.constant 0 : index
      %c0_7 = arith.constant 0 : index
      %10 = vector.load %arg8[%c0_6, %c0_7] : memref<1x128xf32, #tpu.memory_space<vmem>>, vector<1x128xf32>
      %11 = vector.broadcast %10 : vector<1x128xf32> to vector<64x128xf32>
      %12 = arith.subf %9, %11 : vector<64x128xf32>
      %c0_8 = arith.constant 0 : index
      %c0_9 = arith.constant 0 : index
      %13 = vector.load %arg9[%c0_8, %c0_9] : memref<1x128xf32, #tpu.memory_space<vmem>>, vector<1x128xf32>
      %14 = vector.broadcast %13 : vector<1x128xf32> to vector<64x128xf32>
      %15 = arith.mulf %12, %14 : vector<64x128xf32>
      %cst_10 = arith.constant 0.000000e+00 : f32
      %16 = vector.broadcast %cst_10 : f32 to vector<64x128xf32>
      %17 = arith.cmpf oge, %15, %16 : vector<64x128xf32>
      %cst_11 = arith.constant 2.000000e-01 : f32
      %18 = vector.broadcast %cst_11 : f32 to vector<64x128xf32>
      %19 = arith.mulf %18, %15 : vector<64x128xf32>
      %20 = arith.select %17, %15, %19 : vector<64x128xi1>, vector<64x128xf32>
      %21 = arith.truncf %20 : vector<64x128xf32> to vector<64x128xbf16>
      %c0_12 = arith.constant 0 : index
      %c0_13 = arith.constant 0 : index
      %c0_14 = arith.constant 0 : index
      %22 = vector.load %arg5[%c0_12, %c0_13, %c0_14] : memref<1x64x128xbf16, #tpu.memory_space<vmem>>, vector<1x64x128xbf16>
      %23 = vector.shape_cast %22 : vector<1x64x128xbf16> to vector<64x128xbf16>
      %24 = vector.shape_cast %21 : vector<64x128xbf16> to vector<1x64x128xbf16>
      tpu.vector_store %arg5[%c0_12, %c0_13, %c0_14], %24 {strides = array<i32>} : memref<1x64x128xbf16, #tpu.memory_space<vmem>>, vector<1x64x128xbf16>,
    } else {
    }
    return
  }
  func.func @transform_0(%arg0: i32, %arg1: i32, %arg2: i32) -> (i32, i32, i32) {
    %c0_i32 = arith.constant 0 : i32
    %c0_i32_0 = arith.constant 0 : i32
    return %arg0, %arg2, %c0_i32 : i32, i32, i32
  }
  func.func @transform_1(%arg0: i32, %arg1: i32, %arg2: i32) -> (i32, i32) {
    %c0_i32 = arith.constant 0 : i32
    %c0_i32_0 = arith.constant 0 : i32
    %c0_i32_1 = arith.constant 0 : i32
    return %c0_i32, %c0_i32_0 : i32, i32
  }
  func.func @transform_2(%arg0: i32, %arg1: i32, %arg2: i32) -> (i32, i32, i32) {
    %0 = arith.muli %arg2, %arg1 : i32
    %c0_i32 = arith.constant 0 : i32
    %c0_i32_0 = arith.constant 0 : i32
    return %arg0, %0, %c0_i32 : i32, i32, i32
  }
}

</mosaic_0001>

<llo_original>
// kernel: _lambda_.1
$region0: #{_lambda_.1}
  #allocation0 [shape = 'u32[]', space=smem, size = 0x4, offset = 0x4, fixed_abs, tag = 'smem constant byte address 0x4 - core index']
  #allocation1 [shape = 'u32[144,128]{1,0:T(1,128)}', space=vmem, size = 0x12000, scoped, tag = 'internal scratch']
  #allocation2 [shape = 'f32[1,64]{1,0:T(1,128)}', space=vmem, size = 0x200, scoped, tag = 'scratch operand']
  #allocation3 [shape = 'f32[64,64]{1,0:T(8,128)}', space=vmem, size = 0x8000, scoped, tag = 'scratch operand']
  #allocation4 [shape = 'f32[1,128]{1,0:T(1,128)}', space=vmem, size = 0x200, scoped, tag = 'scratch operand']
  #allocation5 [shape = 'f32[1,128]{1,0:T(1,128)}', space=vmem, size = 0x200, scoped, tag = 'scratch operand']
  %s0 = inlined_call_operand.vmem [shape: bf16[2,256,64], index: 0, kind: input, shape index: {}]
  %s1 = inlined_call_operand.vmem [shape: bf16[64,128], index: 1, kind: input, shape index: {}]
  %s2 = inlined_call_operand.vmem [shape: bf16[2,256,128], index: 2, kind: output, shape index: {}]
  %s3 = sld [smem:[#allocation0]]
  $region57: #{_lambda_.1} parent=0
    _
  %s5 = ssub.s32 1, %s3
  %s6 = scalar_select 0, %s5, %s3
  loop: start=0, step=1, limit=18
  $region2: #{_lambda_.1} parent=0 // loop_pre_header
    _
  $region3: #{_lambda_.1} parent=0 // loop_header
    %s8 = sphi 0, %s12
    %p9 = scmp.ge.s32.totalorder %s8, 18
    %s15 = sphi 0, %s34
    %s16 = sphi 0, %s30
    %s17 = sphi 0, %s26
    %s18 = sphi 0, %s15
    %s19 = sphi 0, %s16
    %s20 = sphi 0, %s17
    %s21 = sphi 0, %s18
    %s22 = sphi 0, %s19
    %s23 = sphi 0, %s20
    %s39 = sphi 0, %s41
    %s42 = sphi 0, %s39
    %s43 = sphi 0, %s42
    %s59 = sphi 0, %s43
    %s63 = sphi 0, %s63
    %s65 = sphi 0, %s63
    %s66 = sphi 0, %s65
    %s80 = sphi 0, %s66
    %s90 = sphi 0, %s92
    %s93 = sphi 0, %s90
    %s94 = sphi 0, %s93
    %s110 = sphi 0, %s94
  $region4: #{_lambda_.1} parent=0 // loop_header_branch
    %11 = sbr.rel (%p9) target = $region8
  $region5: #{_lambda_.1} parent=0 // loop_body
    %s13 = ssub.s32 %s8, 1
    %s14 = ssub.s32 %s8, 2
    %s24 = sadd.s32 1, %s17
    %p25 = scmp.ge.s32.totalorder %s24, 4
    %s26 = scalar_select %p25, 0, %s24
    %s27 = sadd.s32 1, %s16
    %s28 = scalar_select %p25, %s27, %s16
    %p29 = scmp.ge.s32.totalorder %s28, 2
    %s30 = scalar_select %p29, 0, %s28
    %s31 = sadd.s32 1, %s15
    %s32 = scalar_select %p29, %s31, %s15
    %p33 = scmp.ge.s32.totalorder %s32, 2
    %s34 = scalar_select %p33, 0, %s32
    %s35 = ssub.s32 %s15, %s34
    %s36 = ssub.s32 %s17, %s26
    %s37 = sor.u32 %s35, %s36
    %p38 = scmp.eq.s32.totalorder %s37, 0
    %s40 = sadd.s32 %s39, 1
    %s41 = scalar_select %p38, %s39, %s40
    %p44 = pneg %p38
    %p45 = scmp.eq.s32.totalorder %s8, 15
    %p46 = por %p44, %p45
    %p47 = scmp.ne.s32.totalorder %s39, %s42
    %p48 = scmp.eq.s32.totalorder %s8, 0
    %p49 = por %p47, %p48
    %p50 = scmp.ne.s32.totalorder %s39, %s42
    %p51 = scmp.eq.s32.totalorder %s13, 15
    %p52 = por %p50, %p51
    %p53 = scmp.ne.s32.totalorder %s42, %s43
    %p54 = scmp.eq.s32.totalorder %s13, 0
    %p55 = por %p53, %p54
    %p56 = scmp.ne.s32.totalorder %s42, %s43
    %p57 = scmp.eq.s32.totalorder %s14, 15
    %p58 = por %p56, %p57
    %p60 = scmp.ne.s32.totalorder %s43, %s59
    %p61 = scmp.eq.s32.totalorder %s14, 0
    %p62 = por %p60, %p61
    %s64 = sadd.s32 %s63, 1
    %p67 = scmp.eq.s32.totalorder %s8, 15
    %p68 = scmp.ne.s32.totalorder %s63, %s65
    %p69 = scmp.eq.s32.totalorder %s8, 0
    %p70 = por %p68, %p69
    %p71 = scmp.ne.s32.totalorder %s63, %s65
    %p72 = scmp.eq.s32.totalorder %s13, 15
    %p73 = por %p71, %p72
    %p74 = scmp.ne.s32.totalorder %s65, %s66
    %p75 = scmp.eq.s32.totalorder %s13, 0
    %p76 = por %p74, %p75
    %p77 = scmp.ne.s32.totalorder %s65, %s66
    %p78 = scmp.eq.s32.totalorder %s14, 15
    %p79 = por %p77, %p78
    %p81 = scmp.ne.s32.totalorder %s66, %s80
    %p82 = scmp.eq.s32.totalorder %s14, 0
    %p83 = por %p81, %p82
    %s84 = smul.u32 %s17, %s16
    %s85 = smul.u32 %s26, %s30
    %s86 = ssub.s32 %s15, %s34
    %s87 = ssub.s32 %s84, %s85
    %s88 = sor.u32 %s86, %s87
    %p89 = scmp.eq.s32.totalorder %s88, 0
    %s91 = sadd.s32 %s90, 1
    %s92 = scalar_select %p89, %s90, %s91
    %p95 = pneg %p89
    %p96 = scmp.eq.s32.totalorder %s8, 15
    %p97 = por %p95, %p96
    %p98 = scmp.ne.s32.totalorder %s90, %s93
    %p99 = scmp.eq.s32.totalorder %s8, 0
    %p100 = por %p98, %p99
    %p101 = scmp.ne.s32.totalorder %s90, %s93
    %p102 = scmp.eq.s32.totalorder %s13, 15
    %p103 = por %p101, %p102
    %p104 = scmp.ne.s32.totalorder %s93, %s94
    %p105 = scmp.eq.s32.totalorder %s13, 0
    %p106 = por %p104, %p105
    %p107 = scmp.ne.s32.totalorder %s93, %s94
    %p108 = scmp.eq.s32.totalorder %s14, 15
    %p109 = por %p107, %p108
    %p111 = scmp.ne.s32.totalorder %s94, %s110
    %p112 = scmp.eq.s32.totalorder %s14, 0
    %p113 = por %p111, %p112
    %p114 = scmp.le.s32.totalorder 1, %s8
    %p115 = scmp.lt.s32.totalorder %s8, 17
    %p116 = pnand %p114, %p115
    %p117 = pneg %p116
    // Predicated region
    $region9: #{_lambda_.1} parent=5 // pred_check
      _
    $region10: #{_lambda_.1} parent=5 // pred_check_branch
      %119 = sbr.rel (%p116) target = $region12
    $region11: #{_lambda_.1} parent=5 // pred_region
      %s120 = ssub.s32 %s8, 1
      // Predicated region
      $region13: #{_lambda_.1} parent=11 // pred_check
        %p121 = pneg %p76
      $region14: #{_lambda_.1} parent=11 // pred_check_branch
        %123 = sbr.rel (%p121) target = $region16
      $region15: #{_lambda_.1} parent=11 // pred_region
        _
      $region16: #{_lambda_.1} parent=11 // pred_fallthru
        _
    $region12: #{_lambda_.1} parent=5 // pred_fallthru
      _
    %p124 = scmp.lt.s32.totalorder %s8, 16
    // Predicated region
    $region17: #{_lambda_.1} parent=5 // pred_check
      %p125 = pneg %p124
    $region18: #{_lambda_.1} parent=5 // pred_check_branch
      %127 = sbr.rel (%p125) target = $region20
    $region19: #{_lambda_.1} parent=5 // pred_region
      // Predicated region
      $region21: #{_lambda_.1} parent=19 // pred_check
        %p128 = pneg %p49
      $region22: #{_lambda_.1} parent=19 // pred_check_branch
        %130 = sbr.rel (%p128) target = $region24
      $region23: #{_lambda_.1} parent=19 // pred_region
        %s131 = smul.u32 8, %s17
        %p132 = scmp.lt.s32.totalorder %s15, 1
        %s133 = scalar_select %p132, %s15, 1
        %p134 = scmp.lt.s32.totalorder %s131, 31
        %s135 = scalar_select %p134, %s131, 31
        %s136 = smul.addr %s133, 32
        %s137 = sadd.s32 %s135, %s136
        %s138 = smul.addr %s137, 4
        %s139 = scalar_lea.vmem %s0, %s138
        %s140 = smul.u32 8, %s17
      $region24: #{_lambda_.1} parent=19 // pred_fallthru
        _
    $region20: #{_lambda_.1} parent=5 // pred_fallthru
      _
    %p141 = scmp.le.s32.totalorder 1, %s8
    %p142 = scmp.lt.s32.totalorder %s8, 17
    %p143 = pnand %p141, %p142
    %p144 = pneg %p143
    // Predicated region
    $region25: #{_lambda_.1} parent=5 // pred_check
      _
    $region26: #{_lambda_.1} parent=5 // pred_check_branch
      %146 = sbr.rel (%p143) target = $region28
    $region27: #{_lambda_.1} parent=5 // pred_region
      %s147 = ssub.s32 %s8, 1
      %s148 = smul.u32 8, %s20
      %p149 = scmp.lt.s32.totalorder %s18, 1
      %s150 = scalar_select %p149, %s18, 1
      %p151 = scmp.lt.s32.totalorder %s148, 31
      %s152 = scalar_select %p151, %s148, 31
      %s153 = smul.addr %s150, 32
      %s154 = sadd.s32 %s152, %s153
      %s155 = smul.addr %s154, 4
      %s156 = scalar_lea.vmem %s0, %s155
      %p157 = pneg %p55
      %p158 = pneg %p52
      %p159 = pneg %p76
      %p160 = pneg %p73
      %p161 = pneg %p106
      %p162 = pneg %p103
      %s163 = smul.u32 %s20, %s19
      %s164 = smul.u32 8, %s163
      %p165 = scmp.lt.s32.totalorder %s18, 1
      %s166 = scalar_select %p165, %s18, 1
      %p167 = scmp.lt.s32.totalorder %s164, 31
      %s168 = scalar_select %p167, %s164, 31
      %s169 = smul.addr %s166, 32
      %s170 = sadd.s32 %s168, %s169
      %s171 = smul.addr %s170, 4
      %s172 = scalar_lea.vmem %s2, %s171
      %s173 = smul.u32 8, %s20
      %p174 = scmp.lt.s32.totalorder %s18, 1
      %s175 = scalar_select %p174, %s18, 1
      %p176 = scmp.lt.s32.totalorder %s173, 31
      %s177 = scalar_select %p176, %s173, 31
      %s178 = smul.addr %s175, 32
      %s179 = sadd.s32 %s177, %s178
      %s180 = smul.addr %s179, 4
      %s181 = scalar_lea.vmem %s0, %s180
      %s182 = smul.u32 8, %s20
      %s183 = smul.u32 %s20, %s19
      %s184 = smul.u32 8, %s183
      %p185 = scmp.lt.s32.totalorder %s18, 1
      %s186 = scalar_select %p185, %s18, 1
      %p187 = scmp.lt.s32.totalorder %s184, 31
      %s188 = scalar_select %p187, %s184, 31
      %s189 = smul.addr %s186, 32
      %s190 = sadd.s32 %s188, %s189
      %s191 = smul.addr %s190, 4
      %s192 = scalar_lea.vmem %s2, %s191
      %s193 = smul.u32 %s20, %s19
      %s194 = smul.u32 8, %s193
      %p196 = scmp.eq.s32.totalorder %s19, 0
      // Predicated region
      $region29: #{_lambda_.1} parent=27 // pred_check
        %p197 = pneg %p196
      $region30: #{_lambda_.1} parent=27 // pred_check_branch
        %199 = sbr.rel (%p197) target = $region32
      $region31: #{_lambda_.1} parent=27 // pred_region
        %v200 = vld [vmem:[%s181] sm:$0xf]
        %v201 = vld [vmem:[%s181 + $0x4] sm:$0xf]
        %v202 = vld [vmem:[%s181 + $0x8] sm:$0xf]
        %v203 = vld [vmem:[%s181 + $0xc] sm:$0xf]
        %v204 = vld [vmem:[%s181 + $0x10] sm:$0xf]
        %v205 = vld [vmem:[%s181 + $0x14] sm:$0xf]
        %v206 = vld [vmem:[%s181 + $0x18] sm:$0xf]
        %v207 = vld [vmem:[%s181 + $0x1c] sm:$0xf]
        %p208 = scmp.eq.s32.totalorder %s20, 0
        // Predicated region
        $region33: #{_lambda_.1} parent=31 // pred_check
          %p209 = pneg %p208
        $region34: #{_lambda_.1} parent=31 // pred_check_branch
          %211 = sbr.rel (%p209) target = $region36
        $region35: #{_lambda_.1} parent=31 // pred_region
          %vm212 = vcmask 516096
          %213 = vst.msk [vmem:[#allocation2] sm:$0x1] %vm212, 0.0
          %vm214 = vcmask 523264
          %215 = vst.msk [vmem:[#allocation3] sm:$0xff] %vm214, 0.0
          %216 = vst.msk [vmem:[#allocation3 + $0x8] sm:$0xff] %vm214, 0.0
          %217 = vst.msk [vmem:[#allocation3 + $0x10] sm:$0xff] %vm214, 0.0
          %218 = vst.msk [vmem:[#allocation3 + $0x18] sm:$0xff] %vm214, 0.0
          %219 = vst.msk [vmem:[#allocation3 + $0x20] sm:$0xff] %vm214, 0.0
          %220 = vst.msk [vmem:[#allocation3 + $0x28] sm:$0xff] %vm214, 0.0
          %221 = vst.msk [vmem:[#allocation3 + $0x30] sm:$0xff] %vm214, 0.0
          %222 = vst.msk [vmem:[#allocation3 + $0x38] sm:$0xff] %vm214, 0.0
        $region36: #{_lambda_.1} parent=31 // pred_fallthru
          _
        %v223 = vld [vmem:[#allocation2] sm:$0x1]
        %v224 = vunpack.c.l.bf16 %v200
        %v225 = vunpack.c.l.bf16 %v201
        %v226 = vunpack.c.l.bf16 %v202
        %v227 = vunpack.c.l.bf16 %v203
        %v228 = vunpack.c.l.bf16 %v204
        %v229 = vunpack.c.l.bf16 %v205
        %v230 = vunpack.c.l.bf16 %v206
        %v231 = vunpack.c.l.bf16 %v207
        %vm232 = vcmask 523264
        %v233 = vsel %vm232, %v224, 0.0
        %v234 = vsel %vm232, %v225, 0.0
        %v235 = vadd.f32 %v233, %v234
        %v236 = vsel %vm232, %v226, 0.0
        %v237 = vadd.f32 %v235, %v236
        %v238 = vsel %vm232, %v227, 0.0
        %v239 = vadd.f32 %v237, %v238
        %v240 = vsel %vm232, %v228, 0.0
        %v241 = vadd.f32 %v239, %v240
        %v242 = vsel %vm232, %v229, 0.0
        %v243 = vadd.f32 %v241, %v242
        %v244 = vsel %vm232, %v230, 0.0
        %v245 = vadd.f32 %v243, %v244
        %v246 = vsel %vm232, %v231, 0.0
        %v247 = vadd.f32 %v245, %v246
        %v248 = vrot.slane %v247, 4
        %v249 = vadd.f32 %v247, %v248
        %v250 = vrot.slane %v249, 2
        %v251 = vadd.f32 %v249, %v250
        %v252 = vrot.slane %v251, 1
        %v253 = vadd.f32 %v251, %v252
        %v254 = vadd.f32 %v223, %v253
        %vm255 = vcmask 516096
        %256 = vst.msk [vmem:[#allocation2] sm:$0x1] %vm255, %v254
        %v257 = vld [vmem:[#allocation3] sm:$0xff]
        %v258 = vld [vmem:[#allocation3 + $0x8] sm:$0xff]
        %v259 = vld [vmem:[#allocation3 + $0x10] sm:$0xff]
        %v260 = vld [vmem:[#allocation3 + $0x18] sm:$0xff]
        %v261 = vld [vmem:[#allocation3 + $0x20] sm:$0xff]
        %v262 = vld [vmem:[#allocation3 + $0x28] sm:$0xff]
        %v263 = vld [vmem:[#allocation3 + $0x30] sm:$0xff]
        %v264 = vld [vmem:[#allocation3 + $0x38] sm:$0xff]
        %v273 = vunpack.c.l.b16 %v200
        %v274 = vunpack.c.l.b16 %v201
        %v275 = vunpack.c.l.b16 %v202
        %v276 = vunpack.c.l.b16 %v203
        %v277 = vunpack.c.l.b16 %v204
        %v278 = vunpack.c.l.b16 %v205
        %v279 = vunpack.c.l.b16 %v206
        %v280 = vunpack.c.l.b16 %v207
        %v281 = vpack.c.b16 %v274, %v273
        %v282 = vpack.c.b16 %v276, %v275
        %v283 = vpack.c.b16 %v278, %v277
        %v284 = vpack.c.b16 %v280, %v279
        %289 = vxpose.xlu0.c.b16.start [1/8] %v281, 128
        %290 = vxpose.xlu0.c.b16.cont [2/8] %v282, 128
        %291 = vxpose.xlu0.c.b16.cont [3/8] %v283, 128
        %292 = vxpose.xlu0.c.b16.cont [4/8] %v284, 128
        %293 = vxpose.xlu0.c.b16.cont [5/8] 0, 128
        %294 = vxpose.xlu0.c.b16.cont [6/8] 0, 128
        %295 = vxpose.xlu0.c.b16.cont [7/8] 0, 128
        %296 = vxpose.xlu0.c.b16.end [8/8] 0, 128
        %v297 = vpop.trf.xlu0
        %v298 = vpop.trf.xlu0
        %v299 = vpop.trf.xlu0
        %v300 = vpop.trf.xlu0
        %v301 = vpop.trf.xlu0
        %v302 = vpop.trf.xlu0
        %v303 = vpop.trf.xlu0
        %v304 = vpop.trf.xlu0
        %v306 = vsel %vm232, %v297, 0
        %v309 = vsel %vm232, %v298, 0
        %v312 = vsel %vm232, %v299, 0
        %v315 = vsel %vm232, %v300, 0
        %317 = vmatprep.subr.bf16.mxu0 0
        %318 = vmatpush1.bf16.msra.mxu0 0
        %319 = vmatprep.subr.bf16.mxu0 0
        %320 = vmatpush1.bf16.msra.mxu0 0
        %321 = vmatprep.subr.bf16.mxu0 0
        %322 = vmatpush1.bf16.msra.mxu0 0
        %323 = vmatprep.subr.bf16.mxu0 0
        %324 = vmatpush1.bf16.msra.mxu0 0
        %325 = vmatprep.subr.bf16.mxu0 0
        %326 = vmatpush1.bf16.msra.mxu0 %v284
        %327 = vmatprep.subr.bf16.mxu0 0
        %328 = vmatpush1.bf16.msra.mxu0 %v283
        %329 = vmatprep.subr.bf16.mxu0 0
        %330 = vmatpush1.bf16.msra.mxu0 %v282
        %331 = vmatprep.subr.bf16.mxu0 0
        %332 = vmatpush1.bf16.msra.mxu0 %v281
        %333 = vmatprep.subr.bf16.mxu0 0
        %334 = vmatpush2.bf16.msra.mxu0 0
        %335 = vmatprep.subr.bf16.mxu0 0
        %336 = vmatpush2.bf16.msra.mxu0 0
        %337 = vmatprep.subr.bf16.mxu0 0
        %338 = vmatpush2.bf16.msra.mxu0 0
        %339 = vmatprep.subr.bf16.mxu0 0
        %340 = vmatpush2.bf16.msra.mxu0 0
        %341 = vmatprep.subr.bf16.mxu0 0
        %342 = vmatpush2.bf16.msra.mxu0 0
        %343 = vmatprep.subr.bf16.mxu0 0
        %344 = vmatpush2.bf16.msra.mxu0 0
        %345 = vmatprep.subr.bf16.mxu0 0
        %346 = vmatpush2.bf16.msra.mxu0 0
        %347 = vmatprep.subr.bf16.mxu0 0
        %348 = vmatpush2.bf16.msra.mxu0 0
        %349 = vmatprep.mubr.bf16.mxu0 0
        %350 = vmatmul.mubr.bf16.gmra.mxu0 %v306
        %v351 = vpop.f32.mrf.mxu0
        %v352 = vadd.f32 0.0, %v351
        %v353 = vpop.f32.mrf.mxu0
        %v354 = vpop.f32.mrf.mxu0
        %v355 = vadd.f32 0.0, %v354
        %v356 = vpop.f32.mrf.mxu0
        %357 = vmatprep.mubr.bf16.mxu0 0
        %358 = vmatmul.mubr.bf16.gmra.mxu0 %v309
        %v359 = vpop.f32.mrf.mxu0
        %v360 = vadd.f32 0.0, %v359
        %v361 = vpop.f32.mrf.mxu0
        %v362 = vpop.f32.mrf.mxu0
        %v363 = vadd.f32 0.0, %v362
        %v364 = vpop.f32.mrf.mxu0
        %365 = vmatprep.mubr.bf16.mxu0 0
        %366 = vmatmul.mubr.bf16.gmra.mxu0 %v312
        %v367 = vpop.f32.mrf.mxu0
        %v368 = vadd.f32 0.0, %v367
        %v369 = vpop.f32.mrf.mxu0
        %v370 = vpop.f32.mrf.mxu0
        %v371 = vadd.f32 0.0, %v370
        %v372 = vpop.f32.mrf.mxu0
        %373 = vmatprep.mubr.bf16.mxu0 0
        %374 = vmatmul.mubr.bf16.gmra.mxu0 %v315
        %v375 = vpop.f32.mrf.mxu0
        %v376 = vadd.f32 0.0, %v375
        %v377 = vpop.f32.mrf.mxu0
        %v378 = vpop.f32.mrf.mxu0
        %v379 = vadd.f32 0.0, %v378
        %v380 = vpop.f32.mrf.mxu0
        %381 = vdwg.mxu0
        %v382 = vadd.f32 %v257, %v352
        %v383 = vadd.f32 %v258, %v355
        %v384 = vadd.f32 %v259, %v360
        %v385 = vadd.f32 %v260, %v363
        %v386 = vadd.f32 %v261, %v368
        %v387 = vadd.f32 %v262, %v371
        %v388 = vadd.f32 %v263, %v376
        %v389 = vadd.f32 %v264, %v379
        %390 = vst.msk [vmem:[#allocation3] sm:$0xff] %vm232, %v382
        %391 = vst.msk [vmem:[#allocation3 + $0x8] sm:$0xff] %vm232, %v383
        %392 = vst.msk [vmem:[#allocation3 + $0x10] sm:$0xff] %vm232, %v384
        %393 = vst.msk [vmem:[#allocation3 + $0x18] sm:$0xff] %vm232, %v385
        %394 = vst.msk [vmem:[#allocation3 + $0x20] sm:$0xff] %vm232, %v386
        %395 = vst.msk [vmem:[#allocation3 + $0x28] sm:$0xff] %vm232, %v387
        %396 = vst.msk [vmem:[#allocation3 + $0x30] sm:$0xff] %vm232, %v388
        %397 = vst.msk [vmem:[#allocation3 + $0x38] sm:$0xff] %vm232, %v389
        %p398 = scmp.eq.s32.totalorder %s20, 3
        // Predicated region
        $region37: #{_lambda_.1} parent=31 // pred_check
          %p399 = pneg %p398
        $region38: #{_lambda_.1} parent=31 // pred_check_branch
          %401 = sbr.rel (%p399) target = $region40
        $region39: #{_lambda_.1} parent=31 // pred_region
          %v402 = vld [vmem:[%s1] sm:$0xf]
          %v403 = vld [vmem:[%s1 + $0x4] sm:$0xf]
          %v404 = vld [vmem:[%s1 + $0x8] sm:$0xf]
          %v405 = vld [vmem:[%s1 + $0xc] sm:$0xf]
          %v406 = vld [vmem:[%s1 + $0x10] sm:$0xf]
          %v407 = vld [vmem:[%s1 + $0x14] sm:$0xf]
          %v408 = vld [vmem:[%s1 + $0x18] sm:$0xf]
          %v409 = vld [vmem:[%s1 + $0x1c] sm:$0xf]
          %v410 = vunpack.c.l.bf16 %v402
          %v411 = vunpack.c.l.bf16 %v403
          %v412 = vunpack.c.l.bf16 %v404
          %v413 = vunpack.c.l.bf16 %v405
          %v414 = vunpack.c.l.bf16 %v406
          %v415 = vunpack.c.l.bf16 %v407
          %v416 = vunpack.c.l.bf16 %v408
          %v417 = vunpack.c.l.bf16 %v409
          %v418 = vld [vmem:[#allocation2] sm:$0x1]
          %v420 = vsel %vm232, %v418, 0
          %422 = vmatprep.subr.mxu0 0.0
          %423 = vmatpush1.msra.mxu0 0.0
          %424 = vmatprep.subr.mxu0 0.0
          %425 = vmatpush1.msra.mxu0 0.0
          %426 = vmatprep.subr.mxu0 0.0
          %427 = vmatpush1.msra.mxu0 0.0
          %428 = vmatprep.subr.mxu0 0.0
          %429 = vmatpush1.msra.mxu0 0.0
          %430 = vmatprep.subr.mxu0 0.0
          %431 = vmatpush1.msra.mxu0 0.0
          %432 = vmatprep.subr.mxu0 0.0
          %433 = vmatpush1.msra.mxu0 0.0
          %434 = vmatprep.subr.mxu0 0.0
          %435 = vmatpush1.msra.mxu0 0.0
          %436 = vmatprep.subr.mxu0 0.0
          %437 = vmatpush1.msra.mxu0 0.0
          %438 = vmatprep.subr.mxu0 0.0
          %439 = vmatpush1.msra.mxu0 %v417
          %440 = vmatprep.subr.mxu0 0.0
          %441 = vmatpush1.msra.mxu0 %v416
          %442 = vmatprep.subr.mxu0 0.0
          %443 = vmatpush1.msra.mxu0 %v415
          %444 = vmatprep.subr.mxu0 0.0
          %445 = vmatpush1.msra.mxu0 %v414
          %446 = vmatprep.subr.mxu0 0.0
          %447 = vmatpush1.msra.mxu0 %v413
          %448 = vmatprep.subr.mxu0 0.0
          %449 = vmatpush1.msra.mxu0 %v412
          %450 = vmatprep.subr.mxu0 0.0
          %451 = vmatpush1.msra.mxu0 %v411
          %452 = vmatprep.subr.mxu0 0.0
          %453 = vmatpush1.msra.mxu0 %v410
          %454 = vmatprep.subr.mxu0 0.0
          %455 = vmatpush2.msra.mxu0 0.0
          %456 = vmatprep.subr.mxu0 0.0
          %457 = vmatpush2.msra.mxu0 0.0
          %458 = vmatprep.subr.mxu0 0.0
          %459 = vmatpush2.msra.mxu0 0.0
          %460 = vmatprep.subr.mxu0 0.0
          %461 = vmatpush2.msra.mxu0 0.0
          %462 = vmatprep.subr.mxu0 0.0
          %463 = vmatpush2.msra.mxu0 0.0
          %464 = vmatprep.subr.mxu0 0.0
          %465 = vmatpush2.msra.mxu0 0.0
          %466 = vmatprep.subr.mxu0 0.0
          %467 = vmatpush2.msra.mxu0 0.0
          %468 = vmatprep.subr.mxu0 0.0
          %469 = vmatpush2.msra.mxu0 0.0
          %470 = vmatprep.subr.mxu0 0.0
          %471 = vmatpush2.msra.mxu0 0.0
          %472 = vmatprep.subr.mxu0 0.0
          %473 = vmatpush2.msra.mxu0 0.0
          %474 = vmatprep.subr.mxu0 0.0
          %475 = vmatpush2.msra.mxu0 0.0
          %476 = vmatprep.subr.mxu0 0.0
          %477 = vmatpush2.msra.mxu0 0.0
          %478 = vmatprep.subr.mxu0 0.0
          %479 = vmatpush2.msra.mxu0 0.0
          %480 = vmatprep.subr.mxu0 0.0
          %481 = vmatpush2.msra.mxu0 0.0
          %482 = vmatprep.subr.mxu0 0.0
          %483 = vmatpush2.msra.mxu0 0.0
          %484 = vmatprep.subr.mxu0 0.0
          %485 = vmatpush2.msra.mxu0 0.0
          %486 = vmatprep.mubr.f32.mxu0 0.0
          %487 = vmatmul.mubr.f32.gmra.mxu0 %v420
          %v488 = vpop.f32.mrf.mxu0
          %v489 = vadd.f32 0.0, %v488
          %v490 = vpop.f32.mrf.mxu0
          %491 = vdwg.mxu0
          %v492 = vld [vmem:[#allocation3] sm:$0xff]
          %v493 = vld [vmem:[#allocation3 + $0x8] sm:$0xff]
          %v494 = vld [vmem:[#allocation3 + $0x10] sm:$0xff]
          %v495 = vld [vmem:[#allocation3 + $0x18] sm:$0xff]
          %v496 = vld [vmem:[#allocation3 + $0x20] sm:$0xff]
          %v497 = vld [vmem:[#allocation3 + $0x28] sm:$0xff]
          %v498 = vld [vmem:[#allocation3 + $0x30] sm:$0xff]
          %v499 = vld [vmem:[#allocation3 + $0x38] sm:$0xff]
          %v501 = vsel %vm232, %v492, 0
          %v504 = vsel %vm232, %v493, 0
          %v507 = vsel %vm232, %v494, 0
          %v510 = vsel %vm232, %v495, 0
          %v513 = vsel %vm232, %v496, 0
          %v516 = vsel %vm232, %v497, 0
          %v519 = vsel %vm232, %v498, 0
          %v522 = vsel %vm232, %v499, 0
          %524 = vmatprep.subr.mxu0 0.0
          %525 = vmatpush1.msra.mxu0 0.0
          %526 = vmatprep.subr.mxu0 0.0
          %527 = vmatpush1.msra.mxu0 0.0
          %528 = vmatprep.subr.mxu0 0.0
          %529 = vmatpush1.msra.mxu0 0.0
          %530 = vmatprep.subr.mxu0 0.0
          %531 = vmatpush1.msra.mxu0 0.0
          %532 = vmatprep.subr.mxu0 0.0
          %533 = vmatpush1.msra.mxu0 0.0
          %534 = vmatprep.subr.mxu0 0.0
          %535 = vmatpush1.msra.mxu0 0.0
          %536 = vmatprep.subr.mxu0 0.0
          %537 = vmatpush1.msra.mxu0 0.0
          %538 = vmatprep.subr.mxu0 0.0
          %539 = vmatpush1.msra.mxu0 0.0
          %540 = vmatprep.subr.mxu0 0.0
          %541 = vmatpush1.msra.mxu0 %v417
          %542 = vmatprep.subr.mxu0 0.0
          %543 = vmatpush1.msra.mxu0 %v416
          %544 = vmatprep.subr.mxu0 0.0
          %545 = vmatpush1.msra.mxu0 %v415
          %546 = vmatprep.subr.mxu0 0.0
          %547 = vmatpush1.msra.mxu0 %v414
          %548 = vmatprep.subr.mxu0 0.0
          %549 = vmatpush1.msra.mxu0 %v413
          %550 = vmatprep.subr.mxu0 0.0
          %551 = vmatpush1.msra.mxu0 %v412
          %552 = vmatprep.subr.mxu0 0.0
          %553 = vmatpush1.msra.mxu0 %v411
          %554 = vmatprep.subr.mxu0 0.0
          %555 = vmatpush1.msra.mxu0 %v410
          %556 = vmatprep.subr.mxu0 0.0
          %557 = vmatpush2.msra.mxu0 0.0
          %558 = vmatprep.subr.mxu0 0.0
          %559 = vmatpush2.msra.mxu0 0.0
          %560 = vmatprep.subr.mxu0 0.0
          %561 = vmatpush2.msra.mxu0 0.0
          %562 = vmatprep.subr.mxu0 0.0
          %563 = vmatpush2.msra.mxu0 0.0
          %564 = vmatprep.subr.mxu0 0.0
          %565 = vmatpush2.msra.mxu0 0.0
          %566 = vmatprep.subr.mxu0 0.0
          %567 = vmatpush2.msra.mxu0 0.0
          %568 = vmatprep.subr.mxu0 0.0
          %569 = vmatpush2.msra.mxu0 0.0
          %570 = vmatprep.subr.mxu0 0.0
          %571 = vmatpush2.msra.mxu0 0.0
          %572 = vmatprep.subr.mxu0 0.0
          %573 = vmatpush2.msra.mxu0 0.0
          %574 = vmatprep.subr.mxu0 0.0
          %575 = vmatpush2.msra.mxu0 0.0
          %576 = vmatprep.subr.mxu0 0.0
          %577 = vmatpush2.msra.mxu0 0.0
          %578 = vmatprep.subr.mxu0 0.0
          %579 = vmatpush2.msra.mxu0 0.0
          %580 = vmatprep.subr.mxu0 0.0
          %581 = vmatpush2.msra.mxu0 0.0
          %582 = vmatprep.subr.mxu0 0.0
          %583 = vmatpush2.msra.mxu0 0.0
          %584 = vmatprep.subr.mxu0 0.0
          %585 = vmatpush2.msra.mxu0 0.0
          %586 = vmatprep.subr.mxu0 0.0
          %587 = vmatpush2.msra.mxu0 0.0
          %588 = vmatprep.mubr.f32.mxu0 0.0
          %589 = vmatmul.mubr.f32.gmra.mxu0 %v501
          %v590 = vpop.f32.mrf.mxu0
          %v591 = vadd.f32 0.0, %v590
          %v592 = vpop.f32.mrf.mxu0
          %593 = vmatprep.mubr.f32.mxu0 0.0
          %594 = vmatmul.mubr.f32.gmra.mxu0 %v504
          %v595 = vpop.f32.mrf.mxu0
          %v596 = vadd.f32 0.0, %v595
          %v597 = vpop.f32.mrf.mxu0
          %598 = vmatprep.mubr.f32.mxu0 0.0
          %599 = vmatmul.mubr.f32.gmra.mxu0 %v507
          %v600 = vpop.f32.mrf.mxu0
          %v601 = vadd.f32 0.0, %v600
          %v602 = vpop.f32.mrf.mxu0
          %603 = vmatprep.mubr.f32.mxu0 0.0
          %604 = vmatmul.mubr.f32.gmra.mxu0 %v510
          %v605 = vpop.f32.mrf.mxu0
          %v606 = vadd.f32 0.0, %v605
          %v607 = vpop.f32.mrf.mxu0
          %608 = vmatprep.mubr.f32.mxu0 0.0
          %609 = vmatmul.mubr.f32.gmra.mxu0 %v513
          %v610 = vpop.f32.mrf.mxu0
          %v611 = vadd.f32 0.0, %v610
          %v612 = vpop.f32.mrf.mxu0
          %613 = vmatprep.mubr.f32.mxu0 0.0
          %614 = vmatmul.mubr.f32.gmra.mxu0 %v516
          %v615 = vpop.f32.mrf.mxu0
          %v616 = vadd.f32 0.0, %v615
          %v617 = vpop.f32.mrf.mxu0
          %618 = vmatprep.mubr.f32.mxu0 0.0
          %619 = vmatmul.mubr.f32.gmra.mxu0 %v519
          %v620 = vpop.f32.mrf.mxu0
          %v621 = vadd.f32 0.0, %v620
          %v622 = vpop.f32.mrf.mxu0
          %623 = vmatprep.mubr.f32.mxu0 0.0
          %624 = vmatmul.mubr.f32.gmra.mxu0 %v522
          %v625 = vpop.f32.mrf.mxu0
          %v626 = vadd.f32 0.0, %v625
          %v627 = vpop.f32.mrf.mxu0
          %628 = vdwg.mxu0
          %v629 = vmul.f32 %v410, %v591
          %v630 = vmul.f32 %v411, %v596
          %v631 = vmul.f32 %v412, %v601
          %v632 = vmul.f32 %v413, %v606
          %v633 = vmul.f32 %v414, %v611
          %v634 = vmul.f32 %v415, %v616
          %v635 = vmul.f32 %v416, %v621
          %v636 = vmul.f32 %v417, %v626
          %v637 = vadd.f32 %v629, %v630
          %v638 = vadd.f32 %v637, %v631
          %v639 = vadd.f32 %v638, %v632
          %v640 = vadd.f32 %v639, %v633
          %v641 = vadd.f32 %v640, %v634
          %v642 = vadd.f32 %v641, %v635
          %v643 = vadd.f32 %v642, %v636
          %v644 = vrot.slane %v643, 4
          %v645 = vadd.f32 %v643, %v644
          %v646 = vrot.slane %v645, 2
          %v647 = vadd.f32 %v645, %v646
          %v648 = vrot.slane %v647, 1
          %v649 = vadd.f32 %v647, %v648
          %651 = vrot.lane.b32.xlu0 %v489, 96
          %v652 = vpop.permute.xlu0 %651
          %v654 = vadd.f32 %v489, %v652
          %655 = vrot.lane.b32.xlu0 %v489, 64
          %v656 = vpop.permute.xlu0 %655
          %v658 = vadd.f32 %v654, %v656
          %659 = vrot.lane.b32.xlu0 %v489, 32
          %v660 = vpop.permute.xlu0 %659
          %v662 = vadd.f32 %v658, %v660
          %v663 = vmul.f32 %v662, 0.0009765625
          %665 = vrot.lane.b32.xlu0 %v649, 96
          %v666 = vpop.permute.xlu0 %665
          %v668 = vadd.f32 %v649, %v666
          %669 = vrot.lane.b32.xlu0 %v649, 64
          %v670 = vpop.permute.xlu0 %669
          %v672 = vadd.f32 %v668, %v670
          %673 = vrot.lane.b32.xlu0 %v649, 32
          %v674 = vpop.permute.xlu0 %673
          %v676 = vadd.f32 %v672, %v674
          %v677 = vmul.f32 %v676, 0.0009765625
          %v678 = vmul.f32 %v663, %v663
          %v679 = vsub.f32 %v677, %v678
          %v680 = vmax.f32 %v679, 0.0
          %v681 = vadd.f32 %v680, 1e-05
          %v682 = vrsqrt.pop %v681
          %684 = vrot.lane.b32.xlu0 %v663, 32
          %v685 = vpop.permute.xlu0 %684
          %687 = vrot.lane.b32.xlu0 %v663, 64
          %v688 = vpop.permute.xlu0 %687
          %690 = vrot.lane.b32.xlu0 %v663, 96
          %v691 = vpop.permute.xlu0 %690
          %vm693 = vcmask 261120
          %v694 = vsel %vm693, %v663, %v685
          %v695 = vsel %vm232, %v694, %v688
          %vm696 = vcmask 785408
          %v697 = vsel %vm696, %v695, %v691
          %698 = vst [vmem:[#allocation4] sm:$0x1] %v697
          %700 = vrot.lane.b32.xlu0 %v682, 32
          %v701 = vpop.permute.xlu0 %700
          %703 = vrot.lane.b32.xlu0 %v682, 64
          %v704 = vpop.permute.xlu0 %703
          %706 = vrot.lane.b32.xlu0 %v682, 96
          %v707 = vpop.permute.xlu0 %706
          %v709 = vsel %vm693, %v682, %v701
          %v710 = vsel %vm232, %v709, %v704
          %v711 = vsel %vm696, %v710, %v707
          %712 = vst [vmem:[#allocation5] sm:$0x1] %v711
        $region40: #{_lambda_.1} parent=31 // pred_fallthru
          _
      $region32: #{_lambda_.1} parent=27 // pred_fallthru
        _
      %p713 = scmp.eq.s32.totalorder %s19, 1
      // Predicated region
      $region41: #{_lambda_.1} parent=27 // pred_check
        %p714 = pneg %p713
      $region42: #{_lambda_.1} parent=27 // pred_check_branch
        %716 = sbr.rel (%p714) target = $region44
      $region43: #{_lambda_.1} parent=27 // pred_region
        %v717 = vld [vmem:[%s181] sm:$0xf]
        %v718 = vld [vmem:[%s181 + $0x4] sm:$0xf]
        %v719 = vld [vmem:[%s181 + $0x8] sm:$0xf]
        %v720 = vld [vmem:[%s181 + $0xc] sm:$0xf]
        %v721 = vld [vmem:[%s181 + $0x10] sm:$0xf]
        %v722 = vld [vmem:[%s181 + $0x14] sm:$0xf]
        %v723 = vld [vmem:[%s181 + $0x18] sm:$0xf]
        %v724 = vld [vmem:[%s181 + $0x1c] sm:$0xf]
        %v725 = vld [vmem:[%s1] sm:$0xf]
        %v726 = vld [vmem:[%s1 + $0x4] sm:$0xf]
        %v727 = vld [vmem:[%s1 + $0x8] sm:$0xf]
        %v728 = vld [vmem:[%s1 + $0xc] sm:$0xf]
        %v729 = vld [vmem:[%s1 + $0x10] sm:$0xf]
        %v730 = vld [vmem:[%s1 + $0x14] sm:$0xf]
        %v731 = vld [vmem:[%s1 + $0x18] sm:$0xf]
        %v732 = vld [vmem:[%s1 + $0x1c] sm:$0xf]
        %v741 = vunpack.c.l.b16 %v717
        %v742 = vunpack.c.l.b16 %v718
        %v743 = vunpack.c.l.b16 %v719
        %v744 = vunpack.c.l.b16 %v720
        %v745 = vunpack.c.l.b16 %v721
        %v746 = vunpack.c.l.b16 %v722
        %v747 = vunpack.c.l.b16 %v723
        %v748 = vunpack.c.l.b16 %v724
        %v749 = vpack.c.b16 %v742, %v741
        %v750 = vpack.c.b16 %v744, %v743
        %v751 = vpack.c.b16 %v746, %v745
        %v752 = vpack.c.b16 %v748, %v747
        %v761 = vunpack.c.l.b16 %v725
        %v762 = vunpack.c.l.b16 %v726
        %v763 = vunpack.c.l.b16 %v727
        %v764 = vunpack.c.l.b16 %v728
        %v765 = vunpack.c.l.b16 %v729
        %v766 = vunpack.c.l.b16 %v730
        %v767 = vunpack.c.l.b16 %v731
        %v768 = vunpack.c.l.b16 %v732
        %v769 = vpack.c.b16 %v762, %v761
        %v770 = vpack.c.b16 %v764, %v763
        %v771 = vpack.c.b16 %v766, %v765
        %v772 = vpack.c.b16 %v768, %v767
        %vm777 = vcmask 523264
        %v779 = vsel %vm777, %v749, 0
        %v782 = vsel %vm777, %v750, 0
        %v785 = vsel %vm777, %v751, 0
        %v788 = vsel %vm777, %v752, 0
        %790 = vmatprep.subr.bf16.mxu0 0
        %791 = vmatpush1.bf16.msra.mxu0 0
        %792 = vmatprep.subr.bf16.mxu0 0
        %793 = vmatpush1.bf16.msra.mxu0 0
        %794 = vmatprep.subr.bf16.mxu0 0
        %795 = vmatpush1.bf16.msra.mxu0 0
        %796 = vmatprep.subr.bf16.mxu0 0
        %797 = vmatpush1.bf16.msra.mxu0 0
        %798 = vmatprep.subr.bf16.mxu0 0
        %799 = vmatpush1.bf16.msra.mxu0 %v772
        %800 = vmatprep.subr.bf16.mxu0 0
        %801 = vmatpush1.bf16.msra.mxu0 %v771
        %802 = vmatprep.subr.bf16.mxu0 0
        %803 = vmatpush1.bf16.msra.mxu0 %v770
        %804 = vmatprep.subr.bf16.mxu0 0
        %805 = vmatpush1.bf16.msra.mxu0 %v769
        %806 = vmatprep.subr.bf16.mxu0 0
        %807 = vmatpush2.bf16.msra.mxu0 0
        %808 = vmatprep.subr.bf16.mxu0 0
        %809 = vmatpush2.bf16.msra.mxu0 0
        %810 = vmatprep.subr.bf16.mxu0 0
        %811 = vmatpush2.bf16.msra.mxu0 0
        %812 = vmatprep.subr.bf16.mxu0 0
        %813 = vmatpush2.bf16.msra.mxu0 0
        %814 = vmatprep.subr.bf16.mxu0 0
        %815 = vmatpush2.bf16.msra.mxu0 0
        %816 = vmatprep.subr.bf16.mxu0 0
        %817 = vmatpush2.bf16.msra.mxu0 0
        %818 = vmatprep.subr.bf16.mxu0 0
        %819 = vmatpush2.bf16.msra.mxu0 0
        %820 = vmatprep.subr.bf16.mxu0 0
        %821 = vmatpush2.bf16.msra.mxu0 0
        %822 = vmatprep.mubr.bf16.mxu0 0
        %823 = vmatmul.mubr.bf16.gmra.mxu0 %v779
        %v824 = vpop.f32.mrf.mxu0
        %v825 = vadd.f32 0.0, %v824
        %v826 = vpop.f32.mrf.mxu0
        %v827 = vpop.f32.mrf.mxu0
        %v828 = vadd.f32 0.0, %v827
        %v829 = vpop.f32.mrf.mxu0
        %830 = vmatprep.mubr.bf16.mxu0 0
        %831 = vmatmul.mubr.bf16.gmra.mxu0 %v782
        %v832 = vpop.f32.mrf.mxu0
        %v833 = vadd.f32 0.0, %v832
        %v834 = vpop.f32.mrf.mxu0
        %v835 = vpop.f32.mrf.mxu0
        %v836 = vadd.f32 0.0, %v835
        %v837 = vpop.f32.mrf.mxu0
        %838 = vmatprep.mubr.bf16.mxu0 0
        %839 = vmatmul.mubr.bf16.gmra.mxu0 %v785
        %v840 = vpop.f32.mrf.mxu0
        %v841 = vadd.f32 0.0, %v840
        %v842 = vpop.f32.mrf.mxu0
        %v843 = vpop.f32.mrf.mxu0
        %v844 = vadd.f32 0.0, %v843
        %v845 = vpop.f32.mrf.mxu0
        %846 = vmatprep.mubr.bf16.mxu0 0
        %847 = vmatmul.mubr.bf16.gmra.mxu0 %v788
        %v848 = vpop.f32.mrf.mxu0
        %v849 = vadd.f32 0.0, %v848
        %v850 = vpop.f32.mrf.mxu0
        %v851 = vpop.f32.mrf.mxu0
        %v852 = vadd.f32 0.0, %v851
        %v853 = vpop.f32.mrf.mxu0
        %854 = vdwg.mxu0
        %v855 = vld [vmem:[#allocation4] sm:$0x1]
        %v857 = vlaneseq
        %v858 = vshrl.u32 %v857, 7
        %v859 = vsub.s32 0, %v858
        %v860 = vrot.slane %v855, %v859
        %v862 = vsub.f32 %v825, %v860
        %v863 = vsub.f32 %v828, %v860
        %v864 = vsub.f32 %v833, %v860
        %v865 = vsub.f32 %v836, %v860
        %v866 = vsub.f32 %v841, %v860
        %v867 = vsub.f32 %v844, %v860
        %v868 = vsub.f32 %v849, %v860
        %v869 = vsub.f32 %v852, %v860
        %v870 = vld [vmem:[#allocation5] sm:$0x1]
        %v872 = vlaneseq
        %v873 = vshrl.u32 %v872, 7
        %v874 = vsub.s32 0, %v873
        %v875 = vrot.slane %v870, %v874
        %v877 = vmul.f32 %v862, %v875
        %v878 = vmul.f32 %v863, %v875
        %v879 = vmul.f32 %v864, %v875
        %v880 = vmul.f32 %v865, %v875
        %v881 = vmul.f32 %v866, %v875
        %v882 = vmul.f32 %v867, %v875
        %v883 = vmul.f32 %v868, %v875
        %v884 = vmul.f32 %v869, %v875
        %vm885 = vcmp.ge.f32.partialorder %v877, 0.0
        %vm886 = vcmp.ge.f32.partialorder %v878, 0.0
        %vm887 = vcmp.ge.f32.partialorder %v879, 0.0
        %vm888 = vcmp.ge.f32.partialorder %v880, 0.0
        %vm889 = vcmp.ge.f32.partialorder %v881, 0.0
        %vm890 = vcmp.ge.f32.partialorder %v882, 0.0
        %vm891 = vcmp.ge.f32.partialorder %v883, 0.0
        %vm892 = vcmp.ge.f32.partialorder %v884, 0.0
        %v893 = vmul.f32 %v877, 0.2
        %v894 = vmul.f32 %v878, 0.2
        %v895 = vmul.f32 %v879, 0.2
        %v896 = vmul.f32 %v880, 0.2
        %v897 = vmul.f32 %v881, 0.2
        %v898 = vmul.f32 %v882, 0.2
        %v899 = vmul.f32 %v883, 0.2
        %v900 = vmul.f32 %v884, 0.2
        %v901 = vsel %vm885, %v877, %v893
        %v902 = vsel %vm886, %v878, %v894
        %v903 = vsel %vm887, %v879, %v895
        %v904 = vsel %vm888, %v880, %v896
        %v905 = vsel %vm889, %v881, %v897
        %v906 = vsel %vm890, %v882, %v898
        %v907 = vsel %vm891, %v883, %v899
        %v908 = vsel %vm892, %v884, %v900
        %v909 = vpack.c.bf16 %v902, %v901
        %v910 = vpack.c.bf16 %v904, %v903
        %v911 = vpack.c.bf16 %v906, %v905
        %v912 = vpack.c.bf16 %v908, %v907
        %v917 = vunpack.c.l.b16 %v909
        %v918 = vunpack.c.h.b16 %v909
        %v919 = vunpack.c.l.b16 %v910
        %v920 = vunpack.c.h.b16 %v910
        %v921 = vunpack.c.l.b16 %v911
        %v922 = vunpack.c.h.b16 %v911
        %v923 = vunpack.c.l.b16 %v912
        %v924 = vunpack.c.h.b16 %v912
        %v925 = vpack.c.b16 %v917, %v917
        %v926 = vpack.c.b16 %v918, %v918
        %v927 = vpack.c.b16 %v919, %v919
        %v928 = vpack.c.b16 %v920, %v920
        %v929 = vpack.c.b16 %v921, %v921
        %v930 = vpack.c.b16 %v922, %v922
        %v931 = vpack.c.b16 %v923, %v923
        %v932 = vpack.c.b16 %v924, %v924
        %941 = vst [vmem:[%s192] sm:$0xf] %v925
        %942 = vst [vmem:[%s192 + $0x4] sm:$0xf] %v926
        %943 = vst [vmem:[%s192 + $0x8] sm:$0xf] %v927
        %944 = vst [vmem:[%s192 + $0xc] sm:$0xf] %v928
        %945 = vst [vmem:[%s192 + $0x10] sm:$0xf] %v929
        %946 = vst [vmem:[%s192 + $0x14] sm:$0xf] %v930
        %947 = vst [vmem:[%s192 + $0x18] sm:$0xf] %v931
        %948 = vst [vmem:[%s192 + $0x1c] sm:$0xf] %v932
      $region44: #{_lambda_.1} parent=27 // pred_fallthru
        _
      %s949 = smul.u32 %s20, %s19
      %s950 = smul.u32 8, %s949
      %p951 = scmp.lt.s32.totalorder %s18, 1
      %s952 = scalar_select %p951, %s18, 1
      %p953 = scmp.lt.s32.totalorder %s950, 31
      %s954 = scalar_select %p953, %s950, 31
      %s955 = smul.addr %s952, 32
      %s956 = sadd.s32 %s954, %s955
      %s957 = smul.addr %s956, 4
      %s958 = scalar_lea.vmem %s2, %s957
      // Predicated region
      $region45: #{_lambda_.1} parent=27 // pred_check
        %p959 = pneg %p103
      $region46: #{_lambda_.1} parent=27 // pred_check_branch
        %961 = sbr.rel (%p959) target = $region48
      $region47: #{_lambda_.1} parent=27 // pred_region
        %s962 = smul.u32 %s20, %s19
        %s963 = smul.u32 8, %s962
      $region48: #{_lambda_.1} parent=27 // pred_fallthru
        _
    $region28: #{_lambda_.1} parent=5 // pred_fallthru
      _
    %p964 = scmp.le.s32.totalorder 2, %s8
    // Predicated region
    $region49: #{_lambda_.1} parent=5 // pred_check
      %p965 = pneg %p964
    $region50: #{_lambda_.1} parent=5 // pred_check_branch
      %967 = sbr.rel (%p965) target = $region52
    $region51: #{_lambda_.1} parent=5 // pred_region
      %s968 = ssub.s32 %s8, 2
      // Predicated region
      $region53: #{_lambda_.1} parent=51 // pred_check
        %p969 = pneg %p109
      $region54: #{_lambda_.1} parent=51 // pred_check_branch
        %971 = sbr.rel (%p969) target = $region56
      $region55: #{_lambda_.1} parent=51 // pred_region
        %s972 = smul.u32 %s23, %s22
        %s973 = smul.u32 8, %s972
        %p974 = scmp.lt.s32.totalorder %s21, 1
        %s975 = scalar_select %p974, %s21, 1
        %p976 = scmp.lt.s32.totalorder %s973, 31
        %s977 = scalar_select %p976, %s973, 31
        %s978 = smul.addr %s975, 32
        %s979 = sadd.s32 %s977, %s978
        %s980 = smul.addr %s979, 4
        %s981 = scalar_lea.vmem %s2, %s980
      $region56: #{_lambda_.1} parent=51 // pred_fallthru
        _
    $region52: #{_lambda_.1} parent=5 // pred_fallthru
      _
  $region6: #{_lambda_.1} parent=0 // loop_footer
    %s12 = sadd.s32 1, %s8
  $region7: #{_lambda_.1} parent=0 // loop_footer_branch
    %7 = sbr.rel target = $region3
  $region8: #{_lambda_.1} parent=0 // loop_exit
    _

</llo_original>
